<compile_context>
chip_gen: v7x
topology: tpu7x:2x2x1
jax: 0.10.0
libtpu: 0.0.40
codegen_flags: <defaults>
</compile_context>

<pallas_src>
import functools
import math

import jax
import jax.numpy as jnp
from jax.experimental import pallas as pl
from jax.experimental.pallas import tpu as pltpu


def _round_up(x, m):
    return ((x + m - 1) // m) * m


def _vmem_capacity_bytes():
    try:
        info = pltpu.get_tpu_info()
        cap = getattr(info, "vmem_capacity_bytes", None)
        if cap:
            return int(cap)
    except Exception:
        pass
    return 64 * 1024 * 1024          # conservative default (v7x per-core VMEM)


def _conv_compiler_params(est_bytes, cap):
    kwargs = dict(dimension_semantics=("parallel", "parallel", "parallel"))
    if est_bytes > 12 * 1024 * 1024:
        limit = max(int(1.4 * est_bytes), 32 * 1024 * 1024)
        kwargs["vmem_limit_bytes"] = int(min(limit, int(0.8 * cap)))
    return pltpu.CompilerParams(**kwargs)


# ----------------------------------------------------------------------------
# STFT: framing fused as hop-sized taps, window + normalization folded into DFT
# ----------------------------------------------------------------------------
def _stft_kernel(x_ref, dft_ref, o_ref, *, taps):
    t = o_ref.shape[0]
    acc = jnp.zeros(o_ref.shape, jnp.float32)
    # TODO(synk): concatenate the taps slices along the lane axis and issue one K=n_fft dot
    # (better MXU feeding); kept as per-tap K=hop dots for lowering robustness.
    for r in range(taps):
        acc += jnp.dot(x_ref[pl.ds(r, t), :], dft_ref[r],
                       preferred_element_type=jnp.float32)
    o_ref[...] = acc.astype(o_ref.dtype)


def stft_pallas(x, n_fft, hop_length, win_length):
    """torchaudio Spectrogram(power=None, center=False, normalized=True, hann window).
    Returns (B*C, T, 2*nbins) f32 with cols [0:nbins]=real, [nbins:2*nbins]=imag."""
    B, C, L = x.shape
    assert win_length == n_fft
    # TODO(synk): hop not dividing n_fft / L needs a gather-based framing fallback.
    assert n_fft % hop_length == 0 and L % hop_length == 0
    taps = n_fft // hop_length
    T = (L - n_fft) // hop_length + 1
    nbins = n_fft // 2 + 1

    n = jnp.arange(n_fft, dtype=jnp.float32)
    window = 0.5 - 0.5 * jnp.cos(2.0 * math.pi * n / win_length)      # periodic hann
    k = jnp.arange(nbins, dtype=jnp.float32)
    ang = 2.0 * math.pi * n[:, None] * k[None, :] / n_fft
    dft = jnp.concatenate([jnp.cos(ang), -jnp.sin(ang)], axis=1)      # (n_fft, 2*nbins)
    # fold Hann window and 'normalized=True' scale into the projection matrix
    dft = dft * (window / jnp.sqrt(jnp.sum(window * window)))[:, None]
    dft = dft.astype(jnp.bfloat16).reshape(taps, hop_length, 2 * nbins)

    x2 = x.reshape(B * C, L // hop_length, hop_length).astype(jnp.bfloat16)
    spec = pl.pallas_call(
        functools.partial(_stft_kernel, taps=taps),
        out_shape=jax.ShapeDtypeStruct((B * C, T, 2 * nbins), jnp.float32),
        grid=(B * C,),
        in_specs=[
            pl.BlockSpec((None, L // hop_length, hop_length), lambda b: (b, 0, 0)),
            pl.BlockSpec((taps, hop_length, 2 * nbins), lambda b: (0, 0, 0)),
        ],
        out_specs=pl.BlockSpec((None, T, 2 * nbins), lambda b: (b, 0, 0)),
        compiler_params=pltpu.CompilerParams(dimension_semantics=("parallel",)),
    )(x2, dft)
    return spec, T, nbins


# ----------------------------------------------------------------------------
# Fused conv2d: channels-last, im2col-in-kernel, in-kernel H padding, bias +
# LeakyReLU epilogue, output written with the next layer's W halo pre-zeroed.
# ----------------------------------------------------------------------------
def _conv_kernel(*refs, resident, kh, kw, sh, sw, dh, dw, ph, H, hout, wout,
                 tw, n_w_tiles, pw_next, slope):
    if resident:
        x_slab = refs[0]
        w_ref, b_ref, o_ref = refs[1:]
        x_rows = None
    else:
        x_rows = refs[:kh]
        x_slab = None
        w_ref, b_ref, o_ref = refs[kh:]

    h = pl.program_id(2)
    TN = o_ref.shape[-1]
    bias = b_ref[...]                                       # (1, TN) f32

    # Zero the W halo that pre-pads the NEXT layer's input (no HBM pad pass).
    if pw_next > 0:
        zeros = jnp.zeros((pw_next, TN), o_ref.dtype)
        o_ref[pl.ds(0, pw_next), :] = zeros
        o_ref[pl.ds(pw_next + wout, pw_next), :] = zeros

    # Per-tap row index and validity mask (implicit zero padding along H).
    rows, masks = [], []
    for i in range(kh):
        r = h * sh + i * dh - ph
        may_oob = (i * dh - ph < 0) or ((hout - 1) * sh + i * dh - ph > H - 1)
        if may_oob:
            valid = jnp.logical_and(r >= 0, r < H)
            r = jnp.clip(r, 0, H - 1)
        else:
            valid = None
        rows.append(r)
        masks.append(valid)

    for wt in range(n_w_tiles):
        w0 = wt * tw
        cur = min(tw, wout - w0)
        acc = jnp.zeros((cur, TN), jnp.float32)              # stays in vregs
        for i in range(kh):
            for j in range(kw):
                c0 = w0 * sw + j * dw
                if sw == 1:
                    idx = pl.ds(c0, cur)
                else:
                    # TODO(synk): strided-W (stride[1] > 1) path untested; module default (1, 1).
                    idx = pl.ds(c0, cur, stride=sw)
                if resident:
                    a = x_slab[rows[i], idx, :]
                else:
                    a = x_rows[i][idx, :]
                if masks[i] is not None:
                    a = a * masks[i].astype(a.dtype)
                acc += jnp.dot(a, w_ref[i, j], preferred_element_type=jnp.float32)
        out = acc + bias
        if slope is not None:                                # LeakyReLU
            out = jnp.where(out >= 0, out, slope * out)
        o_ref[pl.ds(pw_next + w0, cur), :] = out.astype(o_ref.dtype)


def conv2d_fused(x, w4, bias, *, stride, dilation, pad_h, pw_next, slope, out_dtype):
    """Channels-last conv2d with fused im2col + H padding + bias + LeakyReLU.
    x:   (B, H, W_stored, Cin) bf16; W_stored already contains this layer's W halo zeros.
    w4:  (kh, kw, Cin, CoutP) bf16;  bias: (1, CoutP) f32.
    Output: (B, Hout, Wout + 2*pw_next, CoutP), W borders zeroed for the next layer."""
    B, H, W_st, Cin = x.shape
    kh, kw, cin_w, CoutP = w4.shape
    assert cin_w == Cin and x.dtype == jnp.bfloat16
    sh, sw = stride
    dh, dw = dilation
    ph = pad_h
    Hout = (H + 2 * ph - dh * (kh - 1) - 1) // sh + 1
    Wout = (W_st - dw * (kw - 1) - 1) // sw + 1
    Wout_st = Wout + 2 * pw_next
    out_isz = jnp.dtype(out_dtype).itemsize

    cap = _vmem_capacity_bytes()

    # Cout tile: largest that keeps the double-buffered weight + output tiles well under VMEM.
    TN = 128
    for cand in (512, 256, 128):
        if CoutP % cand == 0 and (2 * kh * kw * Cin * cand * 2
                                  + 2 * Wout_st * cand * out_isz) <= 0.35 * cap:
            TN = cand
            break
    NCO = CoutP // TN

    w_tile = kh * kw * Cin * TN * 2
    o_tile = Wout_st * TN * out_isz
    b_tile = TN * 4
    x_slab_bytes = H * W_st * Cin * 2
    x_rows_bytes = kh * W_st * Cin * 2

    est_res = 2 * (x_slab_bytes + w_tile + o_tile + b_tile) + (1 << 20)
    resident = est_res <= 0.6 * cap
    est = est_res if resident else 2 * (x_rows_bytes + w_tile + o_tile + b_tile) + (1 << 20)

    # W tiling so the f32 accumulator fits in vregs.
    tw = max(8, min(Wout, (16384 // TN) // 8 * 8))
    n_w_tiles = (Wout + tw - 1) // tw

    if resident:
        # One resident slab per batch item: block index depends only on b, so it stays in
        # VMEM across the Hout (and Cout-tile) sweep -- no re-fetch of overlapping rows.
        x_specs = [pl.BlockSpec((None, H, W_st, Cin), lambda n, b, h: (b, 0, 0, 0))]
    else:
        # Fallback for layers whose slab does not fit: kh shifted-row views (refetches rows).
        def _row_map(i):
            def m(n, b, h, i=i):
                return (b, jnp.clip(h * sh + i * dh - ph, 0, H - 1), 0, 0)
            return m
        x_specs = [pl.BlockSpec((None, None, W_st, Cin), _row_map(i)) for i in range(kh)]
        # TODO(synk): for huge Cin also tile the contraction (4th grid axis + f32 scratch).

    kern = functools.partial(
        _conv_kernel, resident=resident, kh=kh, kw=kw, sh=sh, sw=sw, dh=dh, dw=dw,
        ph=ph, H=H, hout=Hout, wout=Wout, tw=tw, n_w_tiles=n_w_tiles,
        pw_next=pw_next, slope=slope)

    out = pl.pallas_call(
        kern,
        out_shape=jax.ShapeDtypeStruct((B, Hout, Wout_st, CoutP), out_dtype),
        grid=(NCO, B, Hout),                     # weight tile changes only on outermost axis
        in_specs=x_specs + [
            pl.BlockSpec((kh, kw, Cin, TN), lambda n, b, h: (0, 0, 0, n)),
            pl.BlockSpec((1, TN), lambda n, b, h: (0, n)),
        ],
        out_specs=pl.BlockSpec((None, None, Wout_st, TN), lambda n, b, h: (b, h, 0, n)),
        compiler_params=_conv_compiler_params(est, cap),
    )(*([x] * len(x_specs)), w4, bias)
    return out


# ----------------------------------------------------------------------------
# Parameter construction (mirrors DiscriminatorSTFT.__init__, weight_norm folded)
# ----------------------------------------------------------------------------
def get_2d_padding(kernel_size, dilation=(1, 1)):
    return ((kernel_size[0] - 1) * dilation[0] // 2,
            (kernel_size[1] - 1) * dilation[1] // 2)


def _weight_norm_weight(v, g):
    norm = jnp.sqrt(jnp.sum(v * v, axis=(1, 2, 3), keepdims=True))
    return g * v / norm


def make_params(key, *, filters, in_channels, out_channels, kernel_size,
                dilations, stride, filters_scale, max_filters):
    spec_channels = 2 * in_channels
    cfgs = [dict(cin=spec_channels, cout=filters, k=kernel_size, stride=(1, 1),
                 dilation=(1, 1), padding=get_2d_padding(kernel_size))]
    in_chs = min(filters_scale * filters, max_filters)
    for i, d in enumerate(dilations):
        out_chs = min(filters_scale ** (i + 1) * filters, max_filters)
        cfgs.append(dict(cin=in_chs, cout=out_chs, k=kernel_size, stride=stride,
                         dilation=(d, 1), padding=get_2d_padding(kernel_size, (d, 1))))
        in_chs = out_chs
    out_chs = min(filters_scale ** (len(dilations) + 1) * filters, max_filters)
    ksq = (kernel_size[0], kernel_size[0])
    cfgs.append(dict(cin=in_chs, cout=out_chs, k=ksq, stride=(1, 1),
                     dilation=(1, 1), padding=get_2d_padding(ksq)))
    cfgs.append(dict(cin=out_chs, cout=out_channels, k=ksq, stride=(1, 1),
                     dilation=(1, 1), padding=get_2d_padding(ksq)))          # conv_post

    params = []
    cin_arr = spec_channels     # channel count of the activation feeding this layer
    for cfg in cfgs:
        key, k1, k2 = jax.random.split(key, 3)
        cout, cin_t = cfg["cout"], cfg["cin"]
        kh, kw = cfg["k"]
        v = 0.1 * jax.random.normal(k1, (cout, cin_t, kh, kw), jnp.float32)
        g = jnp.sqrt(jnp.sum(v * v, axis=(1, 2, 3), keepdims=True))          # torch wn init
        w = _weight_norm_weight(v, g)
        b = 0.01 * jax.random.normal(k2, (cout,), jnp.float32)
        coutp = _round_up(cout, 128)
        w4 = jnp.transpose(w, (2, 3, 1, 0))                                   # (kh, kw, cin, cout)
        w4 = jnp.pad(w4, ((0, 0), (0, 0), (0, cin_arr - cin_t), (0, coutp - cout)))
        params.append(dict(
            w4=w4.astype(jnp.bfloat16),
            bias=jnp.pad(b, (0, coutp - cout)).reshape(1, coutp).astype(jnp.float32),
            cout=cout, stride=cfg["stride"], dilation=cfg["dilation"],
            ph=cfg["padding"][0], pw=cfg["padding"][1]))
        cin_arr = coutp
    return params[:-1], params[-1]


# ----------------------------------------------------------------------------
# Full DiscriminatorSTFT forward
# ----------------------------------------------------------------------------
def discriminator_stft_forward(x, conv_params, post_params, *, n_fft, hop_length,
                               win_length, negative_slope=0.2, spec_scale_pow=0.0):
    B, C, L = x.shape
    spec, T, nbins = stft_pallas(x, n_fft, hop_length, win_length)     # (B*C, T, 2*nbins) f32
    spec = spec.reshape(B, C, T, 2 * nbins)
    real, imag = spec[..., :nbins], spec[..., nbins:]
    if spec_scale_pow != 0.0:
        scale = jnp.power(jnp.sqrt(real * real + imag * imag) + 1e-6, spec_scale_pow)
        real, imag = real * scale, imag * scale
    # channels-last 'b t w (2c)' with torch cat([real, imag], dim=1) channel order,
    # W pre-padded for the first conv (single fused XLA reshuffle, no separate pad pass later).
    z = jnp.stack([real, imag], axis=1)                                  # (B, 2, C, T, nbins)
    z = jnp.transpose(z, (0, 3, 4, 1, 2)).reshape(B, T, nbins, 2 * C)
    pw1 = conv_params[0]["pw"]
    z = jnp.pad(z, ((0, 0), (0, 0), (pw1, pw1), (0, 0))).astype(jnp.bfloat16)

    layers = list(conv_params) + [post_params]
    fmap_meta = []
    for idx, p in enumerate(layers):
        is_post = idx == len(layers) - 1
        pw_next = 0 if is_post else layers[idx + 1]["pw"]
        z = conv2d_fused(
            z, p["w4"], p["bias"], stride=p["stride"], dilation=p["dilation"],
            pad_h=p["ph"], pw_next=pw_next,
            slope=None if is_post else negative_slope,
            out_dtype=jnp.float32 if is_post else jnp.bfloat16)
        if not is_post:
            fmap_meta.append((z, p["cout"], pw_next))

    # Back to the module's NCHW contract; drop lane-padding channels and W halos.
    z_out = jnp.transpose(z[..., :post_params["cout"]], (0, 3, 1, 2))
    # TODO(synk): fmap could stay bf16/channels-last until the consumer to halve boundary traffic.
    fmap_out = []
    for f, cout, pwn in fmap_meta:
        w_log = f.shape[2] - 2 * pwn
        fmap_out.append(jnp.transpose(
            f[:, :, pwn:pwn + w_log, :cout].astype(jnp.float32), (0, 3, 1, 2)))
    return z_out, fmap_out


if __name__ == "__main__":
    # Small but structurally faithful config
    filters = 8
    in_channels = 1
    out_channels = 1
    n_fft = 64
    hop_length = 16
    win_length = 64
    kernel_size = (3, 9)
    dilations = [1, 2, 4]
    stride = (1, 1)
    filters_scale = 1
    max_filters = 1024

    key = jax.random.PRNGKey(0)
    key, kx = jax.random.split(key)
    B, L = 2, 256
    x = jax.random.normal(kx, (B, in_channels, L), jnp.float32)

    conv_params, post_params = make_params(
        key, filters=filters, in_channels=in_channels, out_channels=out_channels,
        kernel_size=kernel_size, dilations=dilations, stride=stride,
        filters_scale=filters_scale, max_filters=max_filters)

    z, fmap = discriminator_stft_forward(
        x, conv_params, post_params,
        n_fft=n_fft, hop_length=hop_length, win_length=win_length)

    jax.block_until_ready(z)
    for f in fmap:
        jax.block_until_ready(f)

    # Expected: T = 1 + (256-64)//16 = 13 frames, W = 64//2+1 = 33 bins
    assert z.shape == (B, out_channels, 13, 33), z.shape
    assert len(fmap) == 1 + len(dilations) + 1, len(fmap)
    assert all(f.shape[1] == p["cout"] for f, p in zip(fmap, conv_params))
    assert all(f.shape[2:] == (13, 33) for f in fmap), [f.shape for f in fmap]
    print("KERNEL_OK")
</pallas_src>

<mosaic_0001>
module attributes {stable_mosaic.version = 11 : i64} {
  func.func @_stft_kernel(%arg0: i32, %arg1: memref<1x16x16xbf16, #tpu.memory_space<vmem>>, %arg2: memref<4x16x66xbf16, #tpu.memory_space<vmem>>, %arg3: memref<1x13x66xf32, #tpu.memory_space<vmem>>) attributes {dimension_semantics = [#tpu.dimension_semantics<parallel>], iteration_bounds = array<i64: 2>, scalar_prefetch = 0 : i64, scratch_operands = 0 : i64, tpu.core_type = #tpu.core_type<tc>, window_params = [{transform_indices = @transform_0, window_bounds = array<i64: 1, 16, 16>}, {pipeline_mode = #tpu.pipeline_mode<synchronous>, transform_indices = @transform_1, window_bounds = array<i64: 4, 16, 66>}, {transform_indices = @transform_2, window_bounds = array<i64: 1, 13, 66>}]} {
    %cst = arith.constant 0.000000e+00 : f32
    %0 = vector.broadcast %cst : f32 to vector<13x66xf32>
    %c0 = arith.constant 0 : index
    %c0_0 = arith.constant 0 : index
    %c0_1 = arith.constant 0 : index
    %1 = vector.load %arg1[%c0, %c0_0, %c0_1] : memref<1x16x16xbf16, #tpu.memory_space<vmem>>, vector<1x13x16xbf16>
    %2 = vector.shape_cast %1 : vector<1x13x16xbf16> to vector<13x16xbf16>
    %c0_2 = arith.constant 0 : index
    %c0_3 = arith.constant 0 : index
    %c0_4 = arith.constant 0 : index
    %3 = vector.load %arg2[%c0_2, %c0_3, %c0_4] : memref<4x16x66xbf16, #tpu.memory_space<vmem>>, vector<1x16x66xbf16>
    %4 = vector.shape_cast %3 : vector<1x16x66xbf16> to vector<16x66xbf16>
    %cst_5 = arith.constant dense<0.000000e+00> : vector<13x66xf32>
    %5 = tpu.matmul %2, %4, %cst_5 {dimension_numbers = #tpu.dot_dimension_numbers<[1], [0], [0], [1], [0, 0, 1, 1], [], []>} : vector<13x16xbf16>, vector<16x66xbf16>, vector<13x66xf32> -> vector<13x66xf32>
    %6 = arith.addf %0, %5 : vector<13x66xf32>
    %c0_6 = arith.constant 0 : index
    %c1 = arith.constant 1 : index
    %c0_7 = arith.constant 0 : index
    %7 = vector.load %arg1[%c0_6, %c1, %c0_7] : memref<1x16x16xbf16, #tpu.memory_space<vmem>>, vector<1x13x16xbf16>
    %8 = vector.shape_cast %7 : vector<1x13x16xbf16> to vector<13x16xbf16>
    %c1_8 = arith.constant 1 : index
    %c0_9 = arith.constant 0 : index
    %c0_10 = arith.constant 0 : index
    %9 = vector.load %arg2[%c1_8, %c0_9, %c0_10] : memref<4x16x66xbf16, #tpu.memory_space<vmem>>, vector<1x16x66xbf16>
    %10 = vector.shape_cast %9 : vector<1x16x66xbf16> to vector<16x66xbf16>
    %cst_11 = arith.constant dense<0.000000e+00> : vector<13x66xf32>
    %11 = tpu.matmul %8, %10, %cst_11 {dimension_numbers = #tpu.dot_dimension_numbers<[1], [0], [0], [1], [0, 0, 1, 1], [], []>} : vector<13x16xbf16>, vector<16x66xbf16>, vector<13x66xf32> -> vector<13x66xf32>
    %12 = arith.addf %6, %11 : vector<13x66xf32>
    %c0_12 = arith.constant 0 : index
    %c2 = arith.constant 2 : index
    %c0_13 = arith.constant 0 : index
    %13 = vector.load %arg1[%c0_12, %c2, %c0_13] : memref<1x16x16xbf16, #tpu.memory_space<vmem>>, vector<1x13x16xbf16>
    %14 = vector.shape_cast %13 : vector<1x13x16xbf16> to vector<13x16xbf16>
    %c2_14 = arith.constant 2 : index
    %c0_15 = arith.constant 0 : index
    %c0_16 = arith.constant 0 : index
    %15 = vector.load %arg2[%c2_14, %c0_15, %c0_16] : memref<4x16x66xbf16, #tpu.memory_space<vmem>>, vector<1x16x66xbf16>
    %16 = vector.shape_cast %15 : vector<1x16x66xbf16> to vector<16x66xbf16>
    %cst_17 = arith.constant dense<0.000000e+00> : vector<13x66xf32>
    %17 = tpu.matmul %14, %16, %cst_17 {dimension_numbers = #tpu.dot_dimension_numbers<[1], [0], [0], [1], [0, 0, 1, 1], [], []>} : vector<13x16xbf16>, vector<16x66xbf16>, vector<13x66xf32> -> vector<13x66xf32>
    %18 = arith.addf %12, %17 : vector<13x66xf32>
    %c0_18 = arith.constant 0 : index
    %c3 = arith.constant 3 : index
    %c0_19 = arith.constant 0 : index
    %19 = vector.load %arg1[%c0_18, %c3, %c0_19] : memref<1x16x16xbf16, #tpu.memory_space<vmem>>, vector<1x13x16xbf16>
    %20 = vector.shape_cast %19 : vector<1x13x16xbf16> to vector<13x16xbf16>
    %c3_20 = arith.constant 3 : index
    %c0_21 = arith.constant 0 : index
    %c0_22 = arith.constant 0 : index
    %21 = vector.load %arg2[%c3_20, %c0_21, %c0_22] : memref<4x16x66xbf16, #tpu.memory_space<vmem>>, vector<1x16x66xbf16>
    %22 = vector.shape_cast %21 : vector<1x16x66xbf16> to vector<16x66xbf16>
    %cst_23 = arith.constant dense<0.000000e+00> : vector<13x66xf32>
    %23 = tpu.matmul %20, %22, %cst_23 {dimension_numbers = #tpu.dot_dimension_numbers<[1], [0], [0], [1], [0, 0, 1, 1], [], []>} : vector<13x16xbf16>, vector<16x66xbf16>, vector<13x66xf32> -> vector<13x66xf32>
    %24 = arith.addf %18, %23 : vector<13x66xf32>
    %c0_24 = arith.constant 0 : index
    %c0_25 = arith.constant 0 : index
    %c0_26 = arith.constant 0 : index
    %25 = vector.load %arg3[%c0_24, %c0_25, %c0_26] : memref<1x13x66xf32, #tpu.memory_space<vmem>>, vector<1x13x66xf32>
    %26 = vector.shape_cast %25 : vector<1x13x66xf32> to vector<13x66xf32>
    %27 = vector.shape_cast %24 : vector<13x66xf32> to vector<1x13x66xf32>
    tpu.vector_store %arg3[%c0_24, %c0_25, %c0_26], %27 {strides = array<i32>} : memref<1x13x66xf32, #tpu.memory_space<vmem>>, vector<1x13x66xf32>,
    return
  }
  func.func @transform_0(%arg0: i32) -> (i32, i32, i32) {
    %c0_i32 = arith.constant 0 : i32
    %c0_i32_0 = arith.constant 0 : i32
    %c0_i32_1 = arith.constant 0 : i32
    return %arg0, %c0_i32, %c0_i32_0 : i32, i32, i32
  }
  func.func @transform_1(%arg0: i32) -> (i32, i32, i32) {
    %c0_i32 = arith.constant 0 : i32
    %c0_i32_0 = arith.constant 0 : i32
    %c0_i32_1 = arith.constant 0 : i32
    %c0_i32_2 = arith.constant 0 : i32
    return %c0_i32, %c0_i32_0, %c0_i32_1 : i32, i32, i32
  }
  func.func @transform_2(%arg0: i32) -> (i32, i32, i32) {
    %c0_i32 = arith.constant 0 : i32
    %c0_i32_0 = arith.constant 0 : i32
    %c0_i32_1 = arith.constant 0 : i32
    return %arg0, %c0_i32, %c0_i32_0 : i32, i32, i32
  }
}

</mosaic_0001>

<llo_original>
// kernel: tpu_custom_call.1
$region0: #{tpu_custom_call.1}
  #allocation0 [shape = 'u32[]', space=smem, size = 0x4, offset = 0x4, fixed_abs, tag = 'smem constant byte address 0x4 - core index']
  #allocation1 [shape = 'u32[144,128]{1,0:T(1,128)}', space=vmem, size = 0x12000, scoped, tag = 'internal scratch']
  %s0 = inlined_call_operand.hbm [shape: bf16[2,16,16], index: 0, kind: input, shape index: {}]
  %s1 = inlined_call_operand.hbm [shape: bf16[4,16,66], index: 1, kind: input, shape index: {}]
  %s2 = inlined_call_operand.vmem [shape: f32[2,13,66], index: 2, kind: output, shape index: {}]
  %s3 = sld [smem:[#allocation0]]
  $region49: #{tpu_custom_call.1} parent=0
    _
  %s5 = ssub.s32 1, %s3
  %s6 = scalar_select 0, %s5, %s3
  $region1: #{tpu_custom_call.1} parent=0
    #allocation2 [shape = 'u8[8192]{0}', space=vmem, size = 0x2000, scoped, tag = 'input window, operand 0']
    #allocation3 [shape = 's32[2]{0}', space=sflag, size = 0x8, scoped, tag = 'scoped memory for tpu_custom_call.1']
    #allocation4 [shape = 'u8[16384]{0}', space=vmem, size = 0x4000, scoped, tag = 'input window, operand 1, single buffered']
    #allocation5 [shape = 's32[1]{0}', space=sflag, size = 0x4, scoped, tag = 'scoped memory for tpu_custom_call.1']
    %7 = vsyncpa [#allocation3], 0
    %s8 = scalar_lea.sflag [#allocation3], 1
    %9 = vsyncpa %s8, 0
    %10 = vsyncpa [#allocation5], 0
    loop: start=0, step=1, limit=4
    $region2: #{tpu_custom_call.1} parent=1 // loop_pre_header
      _
    $region3: #{tpu_custom_call.1} parent=1 // loop_header
      %s12 = sphi 0, %s16
      %p13 = scmp.ge.s32.totalorder %s12, 4
      %s22 = sphi 0, %s24
      %s25 = sphi 0, %s22
      %s26 = sphi 0, %s25
      %s42 = sphi 0, %s26
      %s46 = sphi 0, %s46
      %s48 = sphi 0, %s46
      %s49 = sphi 0, %s48
      %s63 = sphi 0, %s49
      %s69 = sphi 0, %s71
      %s72 = sphi 0, %s69
      %s73 = sphi 0, %s72
      %s89 = sphi 0, %s73
    $region4: #{tpu_custom_call.1} parent=1 // loop_header_branch
      %15 = sbr.rel (%p13) target = $region8
    $region5: #{tpu_custom_call.1} parent=1 // loop_body
      %s17 = ssub.s32 %s12, 1
      %s18 = ssub.s32 %s12, 2
      %s19 = sadd.s32 %s12, 1
      %s20 = ssub.s32 %s12, %s19
      %p21 = scmp.eq.s32.totalorder %s20, 0
      %s23 = sadd.s32 %s22, 1
      %s24 = scalar_select %p21, %s22, %s23
      %p27 = pneg %p21
      %p28 = scmp.eq.s32.totalorder %s12, 1
      %p29 = por %p27, %p28
      %p30 = scmp.ne.s32.totalorder %s22, %s25
      %p31 = scmp.eq.s32.totalorder %s12, 0
      %p32 = por %p30, %p31
      %p33 = scmp.ne.s32.totalorder %s22, %s25
      %p34 = scmp.eq.s32.totalorder %s17, 1
      %p35 = por %p33, %p34
      %p36 = scmp.ne.s32.totalorder %s25, %s26
      %p37 = scmp.eq.s32.totalorder %s17, 0
      %p38 = por %p36, %p37
      %p39 = scmp.ne.s32.totalorder %s25, %s26
      %p40 = scmp.eq.s32.totalorder %s18, 1
      %p41 = por %p39, %p40
      %p43 = scmp.ne.s32.totalorder %s26, %s42
      %p44 = scmp.eq.s32.totalorder %s18, 0
      %p45 = por %p43, %p44
      %s47 = sadd.s32 %s46, 1
      %p50 = scmp.eq.s32.totalorder %s12, 1
      %p51 = scmp.ne.s32.totalorder %s46, %s48
      %p52 = scmp.eq.s32.totalorder %s12, 0
      %p53 = por %p51, %p52
      %p54 = scmp.ne.s32.totalorder %s46, %s48
      %p55 = scmp.eq.s32.totalorder %s17, 1
      %p56 = por %p54, %p55
      %p57 = scmp.ne.s32.totalorder %s48, %s49
      %p58 = scmp.eq.s32.totalorder %s17, 0
      %p59 = por %p57, %p58
      %p60 = scmp.ne.s32.totalorder %s48, %s49
      %p61 = scmp.eq.s32.totalorder %s18, 1
      %p62 = por %p60, %p61
      %p64 = scmp.ne.s32.totalorder %s49, %s63
      %p65 = scmp.eq.s32.totalorder %s18, 0
      %p66 = por %p64, %p65
      %s67 = ssub.s32 %s12, %s19
      %p68 = scmp.eq.s32.totalorder %s67, 0
      %s70 = sadd.s32 %s69, 1
      %s71 = scalar_select %p68, %s69, %s70
      %p74 = pneg %p68
      %p75 = scmp.eq.s32.totalorder %s12, 1
      %p76 = por %p74, %p75
      %p77 = scmp.ne.s32.totalorder %s69, %s72
      %p78 = scmp.eq.s32.totalorder %s12, 0
      %p79 = por %p77, %p78
      %p80 = scmp.ne.s32.totalorder %s69, %s72
      %p81 = scmp.eq.s32.totalorder %s17, 1
      %p82 = por %p80, %p81
      %p83 = scmp.ne.s32.totalorder %s72, %s73
      %p84 = scmp.eq.s32.totalorder %s17, 0
      %p85 = por %p83, %p84
      %p86 = scmp.ne.s32.totalorder %s72, %s73
      %p87 = scmp.eq.s32.totalorder %s18, 1
      %p88 = por %p86, %p87
      %p90 = scmp.ne.s32.totalorder %s73, %s89
      %p91 = scmp.eq.s32.totalorder %s18, 0
      %p92 = por %p90, %p91
      %p93 = scmp.le.s32.totalorder 1, %s12
      %p94 = scmp.lt.s32.totalorder %s12, 3
      %p95 = pnand %p93, %p94
      %p96 = pneg %p95
      // Predicated region
      $region9: #{tpu_custom_call.1} parent=5 // pred_check
        _
      $region10: #{tpu_custom_call.1} parent=5 // pred_check_branch
        %98 = sbr.rel (%p95) target = $region12
      $region11: #{tpu_custom_call.1} parent=5 // pred_region
        %s99 = ssub.s32 %s12, 1
        // Predicated region
        $region13: #{tpu_custom_call.1} parent=11 // pred_check
          %p100 = pneg %p59
        $region14: #{tpu_custom_call.1} parent=11 // pred_check_branch
          %102 = sbr.rel (%p100) target = $region16
        $region15: #{tpu_custom_call.1} parent=11 // pred_region
          %s104 = ssub.s32 512, 512
          %105 = vsyncadd [#allocation5], %s104
          %s106 = sshll.u32 [#allocation4], 4
          %s107 = int_to_ptr.vmem [resolvable:$true] %s106
          %112 = dma.hbm_to_vmem [thread:$0]  %s1, 512, %s107, [#allocation5], 64, 64, 4
        $region16: #{tpu_custom_call.1} parent=11 // pred_fallthru
          _
      $region12: #{tpu_custom_call.1} parent=5 // pred_fallthru
        _
      %p113 = scmp.lt.s32.totalorder %s12, 2
      // Predicated region
      $region17: #{tpu_custom_call.1} parent=5 // pred_check
        %p114 = pneg %p113
      $region18: #{tpu_custom_call.1} parent=5 // pred_check_branch
        %116 = sbr.rel (%p114) target = $region20
      $region19: #{tpu_custom_call.1} parent=5 // pred_region
        // Predicated region
        $region21: #{tpu_custom_call.1} parent=19 // pred_check
          %p117 = pneg %p32
        $region22: #{tpu_custom_call.1} parent=19 // pred_check_branch
          %119 = sbr.rel (%p117) target = $region24
        $region23: #{tpu_custom_call.1} parent=19 // pred_region
          %s120 = sand.u32 %s22, 1
          %s121 = scalar_lea.sflag [#allocation3], %s120
          %s122 = sand.u32 %s22, 1
          %s123 = smul.addr %s122, 8
          %s124 = scalar_lea.vmem [#allocation2], %s123
          %s126 = ssub.s32 128, 128
          %127 = vsyncadd %s121, %s126
          %s128 = smul.addr %s12, 2
          %s129 = smul.addr %s128, 64
          %s130 = scalar_lea.hbm %s0, %s129
          %s131 = sshll.u32 %s124, 4
          %s132 = int_to_ptr.vmem [resolvable:$true] %s131
          %137 = dma.hbm_to_vmem [thread:$0]  %s130, 128, %s132, %s121, 64, 64, 4
        $region24: #{tpu_custom_call.1} parent=19 // pred_fallthru
          _
      $region20: #{tpu_custom_call.1} parent=5 // pred_fallthru
        _
      %p138 = scmp.le.s32.totalorder 1, %s12
      %p139 = scmp.lt.s32.totalorder %s12, 3
      %p140 = pnand %p138, %p139
      %p141 = pneg %p140
      // Predicated region
      $region25: #{tpu_custom_call.1} parent=5 // pred_check
        _
      $region26: #{tpu_custom_call.1} parent=5 // pred_check_branch
        %143 = sbr.rel (%p140) target = $region28
      $region27: #{tpu_custom_call.1} parent=5 // pred_region
        %s144 = ssub.s32 %s12, 1
        %s145 = sand.u32 %s25, 1
        %s146 = scalar_lea.sflag [#allocation3], %s145
        %s147 = sand.u32 %s25, 1
        %s148 = smul.addr %s147, 8
        %s149 = scalar_lea.vmem [#allocation2], %s148
        // Predicated region
        $region29: #{tpu_custom_call.1} parent=27 // pred_check
          %p150 = pneg %p38
        $region30: #{tpu_custom_call.1} parent=27 // pred_check_branch
          %152 = sbr.rel (%p150) target = $region32
        $region31: #{tpu_custom_call.1} parent=27 // pred_region
          %153 = dma.done %s146, 128
        $region32: #{tpu_custom_call.1} parent=27 // pred_fallthru
          _
        // Predicated region
        $region33: #{tpu_custom_call.1} parent=27 // pred_check
          %p154 = pneg %p59
        $region34: #{tpu_custom_call.1} parent=27 // pred_check_branch
          %156 = sbr.rel (%p154) target = $region36
        $region35: #{tpu_custom_call.1} parent=27 // pred_region
          %157 = dma.done [#allocation5], 512
        $region36: #{tpu_custom_call.1} parent=27 // pred_fallthru
          _
        %s158 = sand.u32 %s25, 1
        %s159 = scalar_lea.sflag [#allocation3], %s158
        %s160 = sand.u32 %s25, 1
        %s161 = smul.addr %s160, 8
        %s162 = scalar_lea.vmem [#allocation2], %s161
        %p163 = pneg %p38
        %p164 = pneg %p35
        %p165 = pneg %p59
        %p166 = pneg %p56
        %p167 = pneg %p85
        %p168 = pneg %p82
        %p169 = scmp.lt.s32.totalorder %s17, 1
        %s170 = scalar_select %p169, %s17, 1
        %s171 = smul.addr %s170, 2
        %s172 = smul.addr %s171, 8
        %s173 = scalar_lea.vmem %s2, %s172
        %p174 = scmp.lt.s32.totalorder %s17, 1
        %s175 = scalar_select %p174, %s17, 1
        %s176 = smul.addr %s175, 2
        %s177 = smul.addr %s176, 8
        %s178 = scalar_lea.vmem %s2, %s177
        %v180 = vld [vmem:[%s149] sm:$0xf]
        %v181 = vld [vmem:[%s149 + $0x4] sm:$0x7]
        %v182 = vld [vmem:[#allocation4] sm:$0xf]
        %v183 = vld [vmem:[#allocation4 + $0x4] sm:$0xf]
        %s184 = scalar_lea.vmem [#allocation4], 8
        %v185 = vld [vmem:[%s184] sm:$0xf]
        %v186 = vld [vmem:[%s184 + $0x4] sm:$0xf]
        %v189 = vunpack.c.l.b16 %v180
        %v190 = vunpack.c.l.b16 %v181
        %v191 = vpack.c.b16 %v190, %v189
        %v193 = vshrl.u32 %v191, 16
        %v195 = vshll.u32 %v191, 16
        %v197 = vrot.slane %v195, 1
        %v198 = vor.u32 %v193, %v197
        %v201 = vunpack.c.l.b16 %v185
        %v202 = vunpack.c.l.b16 %v186
        %v203 = vpack.c.b16 %v202, %v201
        %vm205 = vcmask 130048
        %v207 = vsel %vm205, %v198, 0
        %209 = vmatprep.subr.bf16.mxu0 0
        %210 = vmatpush1.bf16.msra.mxu0 %v203
        %211 = vmatprep.subr.bf16.mxu0 0
        %212 = vmatpush1.bf16.msra.mxu0 0
        %213 = vmatprep.subr.bf16.mxu0 0
        %214 = vmatpush1.bf16.msra.mxu0 0
        %215 = vmatprep.subr.bf16.mxu0 0
        %216 = vmatpush1.bf16.msra.mxu0 0
        %217 = vmatprep.subr.bf16.mxu0 0
        %218 = vmatpush1.bf16.msra.mxu0 0
        %219 = vmatprep.subr.bf16.mxu0 0
        %220 = vmatpush1.bf16.msra.mxu0 0
        %221 = vmatprep.subr.bf16.mxu0 0
        %222 = vmatpush1.bf16.msra.mxu0 0
        %223 = vmatprep.subr.bf16.mxu0 0
        %224 = vmatpush1.bf16.msra.mxu0 0
        %225 = vmatprep.subr.bf16.mxu0 0
        %226 = vmatpush1.bf16.msra.mxu0 0
        %227 = vmatprep.subr.bf16.mxu0 0
        %228 = vmatpush1.bf16.msra.mxu0 0
        %229 = vmatprep.subr.bf16.mxu0 0
        %230 = vmatpush1.bf16.msra.mxu0 0
        %231 = vmatprep.subr.bf16.mxu0 0
        %232 = vmatpush1.bf16.msra.mxu0 0
        %233 = vmatprep.subr.bf16.mxu0 0
        %234 = vmatpush1.bf16.msra.mxu0 0
        %235 = vmatprep.subr.bf16.mxu0 0
        %236 = vmatpush1.bf16.msra.mxu0 0
        %237 = vmatprep.subr.bf16.mxu0 0
        %238 = vmatpush1.bf16.msra.mxu0 0
        %239 = vmatprep.subr.bf16.mxu0 0
        %240 = vmatpush1.bf16.msra.mxu0 0
        %241 = vmatprep.mubr.bf16.mxu0 0
        %242 = vmatmul.mubr.bf16.gmra.mrb[0].mxu0 %v207
        %v243 = vpop.f32.mrb[0].mxu0
        %v244 = vadd.f32 0.0, %v243
        %v245 = vpop.f32.mrb[0].mxu0
        %v246 = vpop.f32.mrb[0].mxu0
        %v247 = vadd.f32 0.0, %v246
        %v248 = vpop.f32.mrb[0].mxu0
        %249 = vdwg.mxu0
        %v252 = vunpack.c.l.b16 %v182
        %v253 = vunpack.c.l.b16 %v183
        %v254 = vpack.c.b16 %v253, %v252
        %v256 = vsel %vm205, %v191, 0
        %258 = vmatprep.subr.bf16.mxu0 0
        %259 = vmatpush1.bf16.msra.mxu0 %v254
        %260 = vmatprep.subr.bf16.mxu0 0
        %261 = vmatpush1.bf16.msra.mxu0 0
        %262 = vmatprep.subr.bf16.mxu0 0
        %263 = vmatpush1.bf16.msra.mxu0 0
        %264 = vmatprep.subr.bf16.mxu0 0
        %265 = vmatpush1.bf16.msra.mxu0 0
        %266 = vmatprep.subr.bf16.mxu0 0
        %267 = vmatpush1.bf16.msra.mxu0 0
        %268 = vmatprep.subr.bf16.mxu0 0
        %269 = vmatpush1.bf16.msra.mxu0 0
        %270 = vmatprep.subr.bf16.mxu0 0
        %271 = vmatpush1.bf16.msra.mxu0 0
        %272 = vmatprep.subr.bf16.mxu0 0
        %273 = vmatpush1.bf16.msra.mxu0 0
        %274 = vmatprep.subr.bf16.mxu0 0
        %275 = vmatpush1.bf16.msra.mxu0 0
        %276 = vmatprep.subr.bf16.mxu0 0
        %277 = vmatpush1.bf16.msra.mxu0 0
        %278 = vmatprep.subr.bf16.mxu0 0
        %279 = vmatpush1.bf16.msra.mxu0 0
        %280 = vmatprep.subr.bf16.mxu0 0
        %281 = vmatpush1.bf16.msra.mxu0 0
        %282 = vmatprep.subr.bf16.mxu0 0
        %283 = vmatpush1.bf16.msra.mxu0 0
        %284 = vmatprep.subr.bf16.mxu0 0
        %285 = vmatpush1.bf16.msra.mxu0 0
        %286 = vmatprep.subr.bf16.mxu0 0
        %287 = vmatpush1.bf16.msra.mxu0 0
        %288 = vmatprep.subr.bf16.mxu0 0
        %289 = vmatpush1.bf16.msra.mxu0 0
        %290 = vmatprep.mubr.bf16.mxu0 0
        %291 = vmatmul.mubr.bf16.gmra.mrb[0].mxu0 %v256
        %v292 = vpop.f32.mrb[0].mxu0
        %v293 = vadd.f32 %v244, %v292
        %v294 = vpop.f32.mrb[0].mxu0
        %v295 = vpop.f32.mrb[0].mxu0
        %v296 = vadd.f32 %v247, %v295
        %v297 = vpop.f32.mrb[0].mxu0
        %298 = vdwg.mxu0
        %v299 = vld [vmem:[%s149] sm:$0xe]
        %v300 = vld [vmem:[%s149 + $0x4] sm:$0xf]
        %s301 = scalar_lea.vmem [#allocation4], 16
        %v302 = vld [vmem:[%s301] sm:$0xf]
        %v303 = vld [vmem:[%s301 + $0x4] sm:$0xf]
        %v306 = vunpack.c.l.b16 %v299
        %v307 = vunpack.c.l.b16 %v300
        %v308 = vpack.c.b16 %v307, %v306
        %v309 = vrot.slane %v308, 1
        %v312 = vunpack.c.l.b16 %v302
        %v313 = vunpack.c.l.b16 %v303
        %v314 = vpack.c.b16 %v313, %v312
        %v317 = vsel %vm205, %v309, 0
        %319 = vmatprep.subr.bf16.mxu0 0
        %320 = vmatpush1.bf16.msra.mxu0 %v314
        %321 = vmatprep.subr.bf16.mxu0 0
        %322 = vmatpush1.bf16.msra.mxu0 0
        %323 = vmatprep.subr.bf16.mxu0 0
        %324 = vmatpush1.bf16.msra.mxu0 0
        %325 = vmatprep.subr.bf16.mxu0 0
        %326 = vmatpush1.bf16.msra.mxu0 0
        %327 = vmatprep.subr.bf16.mxu0 0
        %328 = vmatpush1.bf16.msra.mxu0 0
        %329 = vmatprep.subr.bf16.mxu0 0
        %330 = vmatpush1.bf16.msra.mxu0 0
        %331 = vmatprep.subr.bf16.mxu0 0
        %332 = vmatpush1.bf16.msra.mxu0 0
        %333 = vmatprep.subr.bf16.mxu0 0
        %334 = vmatpush1.bf16.msra.mxu0 0
        %335 = vmatprep.subr.bf16.mxu0 0
        %336 = vmatpush1.bf16.msra.mxu0 0
        %337 = vmatprep.subr.bf16.mxu0 0
        %338 = vmatpush1.bf16.msra.mxu0 0
        %339 = vmatprep.subr.bf16.mxu0 0
        %340 = vmatpush1.bf16.msra.mxu0 0
        %341 = vmatprep.subr.bf16.mxu0 0
        %342 = vmatpush1.bf16.msra.mxu0 0
        %343 = vmatprep.subr.bf16.mxu0 0
        %344 = vmatpush1.bf16.msra.mxu0 0
        %345 = vmatprep.subr.bf16.mxu0 0
        %346 = vmatpush1.bf16.msra.mxu0 0
        %347 = vmatprep.subr.bf16.mxu0 0
        %348 = vmatpush1.bf16.msra.mxu0 0
        %349 = vmatprep.subr.bf16.mxu0 0
        %350 = vmatpush1.bf16.msra.mxu0 0
        %351 = vmatprep.mubr.bf16.mxu0 0
        %352 = vmatmul.mubr.bf16.gmra.mrb[0].mxu0 %v317
        %v353 = vpop.f32.mrb[0].mxu0
        %v354 = vadd.f32 0.0, %v353
        %v355 = vpop.f32.mrb[0].mxu0
        %v356 = vpop.f32.mrb[0].mxu0
        %v357 = vadd.f32 0.0, %v356
        %v358 = vpop.f32.mrb[0].mxu0
        %359 = vdwg.mxu0
        %v360 = vadd.f32 %v293, %v354
        %v361 = vadd.f32 %v296, %v357
        %s362 = scalar_lea.vmem [#allocation4], 24
        %v363 = vld [vmem:[%s362] sm:$0xf]
        %v364 = vld [vmem:[%s362 + $0x4] sm:$0xf]
        %v366 = vshrl.u32 %v308, 16
        %v368 = vrot.slane %v366, 1
        %v369 = vshll.u32 %v308, 16
        %v371 = vrot.slane %v369, 2
        %v372 = vor.u32 %v368, %v371
        %v375 = vunpack.c.l.b16 %v363
        %v376 = vunpack.c.l.b16 %v364
        %v377 = vpack.c.b16 %v376, %v375
        %v380 = vsel %vm205, %v372, 0
        %382 = vmatprep.subr.bf16.mxu0 0
        %383 = vmatpush1.bf16.msra.mxu0 %v377
        %384 = vmatprep.subr.bf16.mxu0 0
        %385 = vmatpush1.bf16.msra.mxu0 0
        %386 = vmatprep.subr.bf16.mxu0 0
        %387 = vmatpush1.bf16.msra.mxu0 0
        %388 = vmatprep.subr.bf16.mxu0 0
        %389 = vmatpush1.bf16.msra.mxu0 0
        %390 = vmatprep.subr.bf16.mxu0 0
        %391 = vmatpush1.bf16.msra.mxu0 0
        %392 = vmatprep.subr.bf16.mxu0 0
        %393 = vmatpush1.bf16.msra.mxu0 0
        %394 = vmatprep.subr.bf16.mxu0 0
        %395 = vmatpush1.bf16.msra.mxu0 0
        %396 = vmatprep.subr.bf16.mxu0 0
        %397 = vmatpush1.bf16.msra.mxu0 0
        %398 = vmatprep.subr.bf16.mxu0 0
        %399 = vmatpush1.bf16.msra.mxu0 0
        %400 = vmatprep.subr.bf16.mxu0 0
        %401 = vmatpush1.bf16.msra.mxu0 0
        %402 = vmatprep.subr.bf16.mxu0 0
        %403 = vmatpush1.bf16.msra.mxu0 0
        %404 = vmatprep.subr.bf16.mxu0 0
        %405 = vmatpush1.bf16.msra.mxu0 0
        %406 = vmatprep.subr.bf16.mxu0 0
        %407 = vmatpush1.bf16.msra.mxu0 0
        %408 = vmatprep.subr.bf16.mxu0 0
        %409 = vmatpush1.bf16.msra.mxu0 0
        %410 = vmatprep.subr.bf16.mxu0 0
        %411 = vmatpush1.bf16.msra.mxu0 0
        %412 = vmatprep.subr.bf16.mxu0 0
        %413 = vmatpush1.bf16.msra.mxu0 0
        %414 = vmatprep.mubr.bf16.mxu0 0
        %415 = vmatmul.mubr.bf16.gmra.mrb[0].mxu0 %v380
        %v416 = vpop.f32.mrb[0].mxu0
        %v417 = vadd.f32 0.0, %v416
        %v418 = vpop.f32.mrb[0].mxu0
        %v419 = vpop.f32.mrb[0].mxu0
        %v420 = vadd.f32 0.0, %v419
        %v421 = vpop.f32.mrb[0].mxu0
        %422 = vdwg.mxu0
        %v423 = vadd.f32 %v360, %v417
        %v424 = vadd.f32 %v361, %v420
        %vm425 = vcmask 539648
        %426 = vst.msk [vmem:[%s178] sm:$0xff] %vm425, %v423
        %vm427 = vcmask 536576
        %428 = vst.msk [vmem:[%s178 + $0x8] sm:$0x1f] %vm427, %v424
        %p429 = scmp.lt.s32.totalorder %s17, 1
        %s430 = scalar_select %p429, %s17, 1
        %s431 = smul.addr %s430, 2
        %s432 = smul.addr %s431, 8
        %s433 = scalar_lea.vmem %s2, %s432
        // Predicated region
        $region37: #{tpu_custom_call.1} parent=27 // pred_check
          %p434 = pneg %p82
        $region38: #{tpu_custom_call.1} parent=27 // pred_check_branch
          %436 = sbr.rel (%p434) target = $region40
        $region39: #{tpu_custom_call.1} parent=27 // pred_region
          _
        $region40: #{tpu_custom_call.1} parent=27 // pred_fallthru
          _
      $region28: #{tpu_custom_call.1} parent=5 // pred_fallthru
        _
      %p437 = scmp.le.s32.totalorder 2, %s12
      // Predicated region
      $region41: #{tpu_custom_call.1} parent=5 // pred_check
        %p438 = pneg %p437
      $region42: #{tpu_custom_call.1} parent=5 // pred_check_branch
        %440 = sbr.rel (%p438) target = $region44
      $region43: #{tpu_custom_call.1} parent=5 // pred_region
        %s441 = ssub.s32 %s12, 2
        // Predicated region
        $region45: #{tpu_custom_call.1} parent=43 // pred_check
          %p442 = pneg %p88
        $region46: #{tpu_custom_call.1} parent=43 // pred_check_branch
          %444 = sbr.rel (%p442) target = $region48
        $region47: #{tpu_custom_call.1} parent=43 // pred_region
          %p445 = scmp.lt.s32.totalorder %s18, 1
          %s446 = scalar_select %p445, %s18, 1
          %s447 = smul.addr %s446, 2
          %s448 = smul.addr %s447, 8
          %s449 = scalar_lea.vmem %s2, %s448
        $region48: #{tpu_custom_call.1} parent=43 // pred_fallthru
          _
      $region44: #{tpu_custom_call.1} parent=5 // pred_fallthru
        _
    $region6: #{tpu_custom_call.1} parent=1 // loop_footer
      %s16 = sadd.s32 1, %s12
    $region7: #{tpu_custom_call.1} parent=1 // loop_footer_branch
      %11 = sbr.rel target = $region3
    $region8: #{tpu_custom_call.1} parent=1 // loop_exit
      _
    %450 = vsyncpa [#allocation3], 1
    %s451 = scalar_lea.sflag [#allocation3], 1
    %452 = vsyncpa %s451, 1
    %453 = vsyncpa [#allocation5], 1

</llo_original>
